<compile_context>
chip_gen: v7x
topology: tpu7x:2x2x1
jax: 0.10.0
libtpu: 0.0.40
codegen_flags: <defaults>
</compile_context>

<pallas_src>
import jax
import jax.numpy as jnp
from jax.experimental import pallas as pl
from jax.experimental.pallas import tpu as pltpu


def _mlp_kernel(obs_ref, opp_ref, w1a_ref, w1b_ref, b1_ref,
                w2_ref, b2_ref, w3_ref, b3_ref, o_ref):
    obs = obs_ref[...]            # (TB, 8)
    opp = opp_ref[:, :2]          # (TB, 2) — columns 0,1; static contiguous slice
    h1 = (jnp.dot(obs, w1a_ref[...], preferred_element_type=jnp.float32)
          + jnp.dot(opp, w1b_ref[...], preferred_element_type=jnp.float32)
          + b1_ref[...])
    h1 = jnp.maximum(h1, 0.0)
    h2 = jnp.dot(h1, w2_ref[...], preferred_element_type=jnp.float32) + b2_ref[...]
    h2 = jnp.maximum(h2, 0.0)
    o_ref[...] = (jnp.dot(h2, w3_ref[...], preferred_element_type=jnp.float32)
                  + b3_ref[...])


def _round_up(n, m):
    return ((n + m - 1) // m) * m


def prepare_params(params):
    """One-time conversion of torch-layout params (W: (out,in), b: (out,)).

    Transposes to (in,out), splits w1 into the own_obs / opponent columns,
    reshapes biases to (1,N).  Call once at parameter-load time, not per step.
    """
    w1 = jnp.asarray(params["w1"], jnp.float32).T   # (10, 64)
    return {
        "w1a": w1[:8, :],                                          # (8, 64)
        "w1b": w1[8:, :],                                          # (2, 64)
        "b1": jnp.asarray(params["b1"], jnp.float32).reshape(1, -1),
        "w2": jnp.asarray(params["w2"], jnp.float32).T,            # (64, 64)
        "b2": jnp.asarray(params["b2"], jnp.float32).reshape(1, -1),
        "w3": jnp.asarray(params["w3"], jnp.float32).T,            # (64, 256)
        "b3": jnp.asarray(params["b3"], jnp.float32).reshape(1, -1),
    }


def action_model_pallas(own_obs, opponent_obs, prepared, *, max_tile=2048):
    """own_obs: (B, 8) f32. opponent_obs: (B, 13) f32 (only cols 0,1 used)."""
    B = own_obs.shape[0]
    d_own = own_obs.shape[1]
    d_opp = opponent_obs.shape[1]
    w1a, w1b, b1 = prepared["w1a"], prepared["w1b"], prepared["b1"]
    w2, b2 = prepared["w2"], prepared["b2"]
    w3, b3 = prepared["w3"], prepared["b3"]
    n_out = w3.shape[1]  # 256

    # Batch tiling: pad B to a sublane multiple, cap tile rows at max_tile so
    # per-step VMEM (with double buffering) stays a few MiB on any generation.
    b_pad = _round_up(max(B, 8), 8)
    tb = min(max_tile, b_pad)
    b_pad = _round_up(b_pad, tb)
    if b_pad != B:
        pad = b_pad - B
        own_obs = jnp.pad(own_obs, ((0, pad), (0, 0)))
        opponent_obs = jnp.pad(opponent_obs, ((0, pad), (0, 0)))

    grid = (pl.cdiv(b_pad, tb),)

    def batch_spec(ncols):
        return pl.BlockSpec((tb, ncols), lambda i: (i, 0))

    def const_spec(shape):
        # Same block index every grid step -> stays resident in VMEM.
        return pl.BlockSpec(shape, lambda i: (0, 0))

    d_hidden = w2.shape[0]  # 64
    weight_bytes = 4 * (w1a.size + w1b.size + b1.size + w2.size + b2.size
                        + w3.size + b3.size)
    cost = pl.CostEstimate(
        flops=2 * b_pad * ((d_own + 2) * d_hidden
                           + d_hidden * d_hidden
                           + d_hidden * n_out),
        transcendentals=0,
        bytes_accessed=4 * b_pad * (d_own + d_opp + n_out) + weight_bytes,
    )

    out = pl.pallas_call(
        _mlp_kernel,
        out_shape=jax.ShapeDtypeStruct((b_pad, n_out), jnp.float32),
        grid=grid,
        in_specs=[
            batch_spec(d_own),
            batch_spec(d_opp),
            const_spec(w1a.shape), const_spec(w1b.shape), const_spec(b1.shape),
            const_spec(w2.shape), const_spec(b2.shape),
            const_spec(w3.shape), const_spec(b3.shape),
        ],
        out_specs=pl.BlockSpec((tb, n_out), lambda i: (i, 0)),
        compiler_params=pltpu.CompilerParams(
            dimension_semantics=("parallel",),          # megacore on v7x
            vmem_limit_bytes=32 * 1024 * 1024,
        ),
        cost_estimate=cost,
    )(own_obs, opponent_obs, w1a, w1b, b1, w2, b2, w3, b3)

    return out[:B] if b_pad != B else out


def centralized_critic_forward(own_obs, opponent_obs, state, prepared):
    """Mirrors CustomTorchCentralizedCriticModel.forward (returns features, state)."""
    own = own_obs.astype(jnp.float32)
    opp = opponent_obs.astype(jnp.float32)
    features = action_model_pallas(own, opp, prepared)
    return features, state


def init_params(key):
    """Deterministic init matching the action_model layer shapes (torch layout)."""
    ks = jax.random.split(key, 6)

    def lin(kw, kb, fan_in, fan_out):
        bound = 1.0 / jnp.sqrt(fan_in)
        w = jax.random.uniform(kw, (fan_out, fan_in), jnp.float32, -bound, bound)
        b = jax.random.uniform(kb, (fan_out,), jnp.float32, -bound, bound)
        return w, b

    w1, b1 = lin(ks[0], ks[1], 10, 64)
    w2, b2 = lin(ks[2], ks[3], 64, 64)
    w3, b3 = lin(ks[4], ks[5], 64, 256)
    return {"w1": w1, "b1": b1, "w2": w2, "b2": b2, "w3": w3, "b3": b3}


def _reference(own_obs, opponent_obs, params):
    x = jnp.concatenate([own_obs, opponent_obs[:, (0, 1)]], axis=1)
    h = jnp.maximum(x @ params["w1"].T + params["b1"], 0.0)
    h = jnp.maximum(h @ params["w2"].T + params["b2"], 0.0)
    return h @ params["w3"].T + params["b3"]


# TODO(synk): value_function() calls value_model({'obs': ...}, state, seq_lens) on an
# nn.Sequential, which is not a valid call in the reference code; not reproduced here.


if __name__ == "__main__":
    key = jax.random.PRNGKey(0)
    k_own, k_opp, k_p, k_own2, k_opp2 = jax.random.split(key, 5)

    params = init_params(k_p)
    prepared = prepare_params(params)

    # Small-batch check (B=2, padded to one sublane tile inside the wrapper).
    B = 2
    own_obs = jax.random.normal(k_own, (B, 8), jnp.float32)
    opponent_obs = jax.random.normal(k_opp, (B, 13), jnp.float32)
    state = []

    features, out_state = centralized_critic_forward(own_obs, opponent_obs, state, prepared)
    features = jax.block_until_ready(features)
    ref = _reference(own_obs, opponent_obs, params)
    assert features.shape == (B, 256)
    assert jnp.allclose(features, ref, atol=1e-4, rtol=1e-4)

    # Multi-tile check (exercises the batch grid + padding path).
    B2 = 100
    own2 = jax.random.normal(k_own2, (B2, 8), jnp.float32)
    opp2 = jax.random.normal(k_opp2, (B2, 13), jnp.float32)
    feats2 = action_model_pallas(own2, opp2, prepared, max_tile=64)
    feats2 = jax.block_until_ready(feats2)
    ref2 = _reference(own2, opp2, params)
    assert feats2.shape == (B2, 256)
    assert jnp.allclose(feats2, ref2, atol=1e-4, rtol=1e-4)

    print("KERNEL_OK")
</pallas_src>

<mosaic_0001>
module attributes {stable_mosaic.version = 11 : i64} {
  func.func @_mlp_kernel(%arg0: i32, %arg1: memref<8x8xf32, #tpu.memory_space<vmem>>, %arg2: memref<8x13xf32, #tpu.memory_space<vmem>>, %arg3: memref<8x64xf32, #tpu.memory_space<vmem>>, %arg4: memref<2x64xf32, #tpu.memory_space<vmem>>, %arg5: memref<1x64xf32, #tpu.memory_space<vmem>>, %arg6: memref<64x64xf32, #tpu.memory_space<vmem>>, %arg7: memref<1x64xf32, #tpu.memory_space<vmem>>, %arg8: memref<64x256xf32, #tpu.memory_space<vmem>>, %arg9: memref<1x256xf32, #tpu.memory_space<vmem>>, %arg10: memref<8x256xf32, #tpu.memory_space<vmem>>) attributes {dimension_semantics = [#tpu.dimension_semantics<parallel>], iteration_bounds = array<i64: 1>, scalar_prefetch = 0 : i64, scratch_operands = 0 : i64, tpu.core_type = #tpu.core_type<tc>, window_params = [{transform_indices = @transform_0, window_bounds = array<i64: 8, 8>}, {transform_indices = @transform_1, window_bounds = array<i64: 8, 13>}, {pipeline_mode = #tpu.pipeline_mode<synchronous>, transform_indices = @transform_2, window_bounds = array<i64: 8, 64>}, {pipeline_mode = #tpu.pipeline_mode<synchronous>, transform_indices = @transform_3, window_bounds = array<i64: 2, 64>}, {pipeline_mode = #tpu.pipeline_mode<synchronous>, transform_indices = @transform_4, window_bounds = array<i64: 1, 64>}, {pipeline_mode = #tpu.pipeline_mode<synchronous>, transform_indices = @transform_5, window_bounds = array<i64: 64, 64>}, {pipeline_mode = #tpu.pipeline_mode<synchronous>, transform_indices = @transform_6, window_bounds = array<i64: 1, 64>}, {pipeline_mode = #tpu.pipeline_mode<synchronous>, transform_indices = @transform_7, window_bounds = array<i64: 64, 256>}, {pipeline_mode = #tpu.pipeline_mode<synchronous>, transform_indices = @transform_8, window_bounds = array<i64: 1, 256>}, {transform_indices = @transform_9, window_bounds = array<i64: 8, 256>}]} {
    %c0 = arith.constant 0 : index
    %c0_0 = arith.constant 0 : index
    %0 = vector.load %arg1[%c0, %c0_0] : memref<8x8xf32, #tpu.memory_space<vmem>>, vector<8x8xf32>
    %c0_1 = arith.constant 0 : index
    %c0_2 = arith.constant 0 : index
    %1 = vector.load %arg2[%c0_1, %c0_2] : memref<8x13xf32, #tpu.memory_space<vmem>>, vector<8x2xf32>
    %c0_3 = arith.constant 0 : index
    %c0_4 = arith.constant 0 : index
    %2 = vector.load %arg3[%c0_3, %c0_4] : memref<8x64xf32, #tpu.memory_space<vmem>>, vector<8x64xf32>
    %cst = arith.constant dense<0.000000e+00> : vector<8x64xf32>
    %3 = tpu.matmul %0, %2, %cst {dimension_numbers = #tpu.dot_dimension_numbers<[1], [0], [0], [1], [0, 0, 1, 1], [], []>} : vector<8x8xf32>, vector<8x64xf32>, vector<8x64xf32> -> vector<8x64xf32>
    %c0_5 = arith.constant 0 : index
    %c0_6 = arith.constant 0 : index
    %4 = vector.load %arg4[%c0_5, %c0_6] : memref<2x64xf32, #tpu.memory_space<vmem>>, vector<2x64xf32>
    %cst_7 = arith.constant dense<0.000000e+00> : vector<8x64xf32>
    %5 = tpu.matmul %1, %4, %cst_7 {dimension_numbers = #tpu.dot_dimension_numbers<[1], [0], [0], [1], [0, 0, 1, 1], [], []>} : vector<8x2xf32>, vector<2x64xf32>, vector<8x64xf32> -> vector<8x64xf32>
    %6 = arith.addf %3, %5 : vector<8x64xf32>
    %c0_8 = arith.constant 0 : index
    %c0_9 = arith.constant 0 : index
    %7 = vector.load %arg5[%c0_8, %c0_9] : memref<1x64xf32, #tpu.memory_space<vmem>>, vector<1x64xf32>
    %8 = vector.broadcast %7 : vector<1x64xf32> to vector<8x64xf32>
    %9 = arith.addf %6, %8 : vector<8x64xf32>
    %cst_10 = arith.constant 0.000000e+00 : f32
    %10 = vector.broadcast %cst_10 : f32 to vector<8x64xf32>
    %11 = arith.maximumf %9, %10 : vector<8x64xf32>
    %c0_11 = arith.constant 0 : index
    %c0_12 = arith.constant 0 : index
    %12 = vector.load %arg6[%c0_11, %c0_12] : memref<64x64xf32, #tpu.memory_space<vmem>>, vector<64x64xf32>
    %cst_13 = arith.constant dense<0.000000e+00> : vector<8x64xf32>
    %13 = tpu.matmul %11, %12, %cst_13 {dimension_numbers = #tpu.dot_dimension_numbers<[1], [0], [0], [1], [0, 0, 1, 1], [], []>} : vector<8x64xf32>, vector<64x64xf32>, vector<8x64xf32> -> vector<8x64xf32>
    %c0_14 = arith.constant 0 : index
    %c0_15 = arith.constant 0 : index
    %14 = vector.load %arg7[%c0_14, %c0_15] : memref<1x64xf32, #tpu.memory_space<vmem>>, vector<1x64xf32>
    %15 = vector.broadcast %14 : vector<1x64xf32> to vector<8x64xf32>
    %16 = arith.addf %13, %15 : vector<8x64xf32>
    %cst_16 = arith.constant 0.000000e+00 : f32
    %17 = vector.broadcast %cst_16 : f32 to vector<8x64xf32>
    %18 = arith.maximumf %16, %17 : vector<8x64xf32>
    %c0_17 = arith.constant 0 : index
    %c0_18 = arith.constant 0 : index
    %19 = vector.load %arg8[%c0_17, %c0_18] : memref<64x256xf32, #tpu.memory_space<vmem>>, vector<64x256xf32>
    %cst_19 = arith.constant dense<0.000000e+00> : vector<8x256xf32>
    %20 = tpu.matmul %18, %19, %cst_19 {dimension_numbers = #tpu.dot_dimension_numbers<[1], [0], [0], [1], [0, 0, 1, 1], [], []>} : vector<8x64xf32>, vector<64x256xf32>, vector<8x256xf32> -> vector<8x256xf32>
    %c0_20 = arith.constant 0 : index
    %c0_21 = arith.constant 0 : index
    %21 = vector.load %arg9[%c0_20, %c0_21] : memref<1x256xf32, #tpu.memory_space<vmem>>, vector<1x256xf32>
    %22 = vector.broadcast %21 : vector<1x256xf32> to vector<8x256xf32>
    %23 = arith.addf %20, %22 : vector<8x256xf32>
    %c0_22 = arith.constant 0 : index
    %c0_23 = arith.constant 0 : index
    %24 = vector.load %arg10[%c0_22, %c0_23] : memref<8x256xf32, #tpu.memory_space<vmem>>, vector<8x256xf32>
    tpu.vector_store %arg10[%c0_22, %c0_23], %23 {strides = array<i32>} : memref<8x256xf32, #tpu.memory_space<vmem>>, vector<8x256xf32>,
    return
  }
  func.func @transform_0(%arg0: i32) -> (i32, i32) {
    %c0_i32 = arith.constant 0 : i32
    %c0_i32_0 = arith.constant 0 : i32
    return %arg0, %c0_i32 : i32, i32
  }
  func.func @transform_1(%arg0: i32) -> (i32, i32) {
    %c0_i32 = arith.constant 0 : i32
    %c0_i32_0 = arith.constant 0 : i32
    return %arg0, %c0_i32 : i32, i32
  }
  func.func @transform_2(%arg0: i32) -> (i32, i32) {
    %c0_i32 = arith.constant 0 : i32
    %c0_i32_0 = arith.constant 0 : i32
    %c0_i32_1 = arith.constant 0 : i32
    return %c0_i32, %c0_i32_0 : i32, i32
  }
  func.func @transform_3(%arg0: i32) -> (i32, i32) {
    %c0_i32 = arith.constant 0 : i32
    %c0_i32_0 = arith.constant 0 : i32
    %c0_i32_1 = arith.constant 0 : i32
    return %c0_i32, %c0_i32_0 : i32, i32
  }
  func.func @transform_4(%arg0: i32) -> (i32, i32) {
    %c0_i32 = arith.constant 0 : i32
    %c0_i32_0 = arith.constant 0 : i32
    %c0_i32_1 = arith.constant 0 : i32
    return %c0_i32, %c0_i32_0 : i32, i32
  }
  func.func @transform_5(%arg0: i32) -> (i32, i32) {
    %c0_i32 = arith.constant 0 : i32
    %c0_i32_0 = arith.constant 0 : i32
    %c0_i32_1 = arith.constant 0 : i32
    return %c0_i32, %c0_i32_0 : i32, i32
  }
  func.func @transform_6(%arg0: i32) -> (i32, i32) {
    %c0_i32 = arith.constant 0 : i32
    %c0_i32_0 = arith.constant 0 : i32
    %c0_i32_1 = arith.constant 0 : i32
    return %c0_i32, %c0_i32_0 : i32, i32
  }
  func.func @transform_7(%arg0: i32) -> (i32, i32) {
    %c0_i32 = arith.constant 0 : i32
    %c0_i32_0 = arith.constant 0 : i32
    %c0_i32_1 = arith.constant 0 : i32
    return %c0_i32, %c0_i32_0 : i32, i32
  }
  func.func @transform_8(%arg0: i32) -> (i32, i32) {
    %c0_i32 = arith.constant 0 : i32
    %c0_i32_0 = arith.constant 0 : i32
    %c0_i32_1 = arith.constant 0 : i32
    return %c0_i32, %c0_i32_0 : i32, i32
  }
  func.func @transform_9(%arg0: i32) -> (i32, i32) {
    %c0_i32 = arith.constant 0 : i32
    %c0_i32_0 = arith.constant 0 : i32
    return %arg0, %c0_i32 : i32, i32
  }
}

</mosaic_0001>

<llo_original>
// kernel: tpu_custom_call.1
$region0: #{tpu_custom_call.1}
  #allocation0 [shape = 'u32[]', space=smem, size = 0x4, offset = 0x4, fixed_abs, tag = 'smem constant byte address 0x4 - core index']
  #allocation1 [shape = 'u32[144,128]{1,0:T(1,128)}', space=vmem, size = 0x12000, scoped, tag = 'internal scratch']
  %s0 = inlined_call_operand.hbm [shape: f32[8,8], index: 0, kind: input, shape index: {}]
  %s1 = inlined_call_operand.hbm [shape: f32[8,13], index: 1, kind: input, shape index: {}]
  %s2 = inlined_call_operand.hbm [shape: f32[8,64], index: 2, kind: input, shape index: {}]
  %s3 = inlined_call_operand.vmem [shape: f32[2,64], index: 3, kind: input, shape index: {}]
  %s4 = inlined_call_operand.vmem [shape: f32[1,64], index: 4, kind: input, shape index: {}]
  %s5 = inlined_call_operand.hbm [shape: f32[64,64], index: 5, kind: input, shape index: {}]
  %s6 = inlined_call_operand.vmem [shape: f32[1,64], index: 6, kind: input, shape index: {}]
  %s7 = inlined_call_operand.hbm [shape: f32[64,256], index: 7, kind: input, shape index: {}]
  %s8 = inlined_call_operand.vmem [shape: f32[1,256], index: 8, kind: input, shape index: {}]
  %s9 = inlined_call_operand.hbm [shape: f32[8,256], index: 9, kind: output, shape index: {}]
  %s10 = sld [smem:[#allocation0]]
  $region66: #{tpu_custom_call.1} parent=0
    _
  %s12 = ssub.s32 1, %s10
  %s13 = scalar_select 0, %s12, %s10
  $region1: #{tpu_custom_call.1} parent=0
    #allocation2 [shape = 'u8[4096]{0}', space=vmem, size = 0x1000, scoped, tag = 'input window, operand 0, single buffered']
    #allocation3 [shape = 's32[1]{0}', space=sflag, size = 0x4, scoped, tag = 'scoped memory for tpu_custom_call.1']
    #allocation4 [shape = 's32[1]{0}', space=sflag, size = 0x4, scoped, tag = 'scoped memory for tpu_custom_call.1']
    #allocation5 [shape = 'u8[4096]{0}', space=vmem, size = 0x1000, scoped, tag = 'input window, operand 1, single buffered']
    #allocation6 [shape = 's32[1]{0}', space=sflag, size = 0x4, scoped, tag = 'scoped memory for tpu_custom_call.1']
    #allocation7 [shape = 'u8[4096]{0}', space=vmem, size = 0x1000, scoped, tag = 'input window, operand 2, single buffered']
    #allocation8 [shape = 'u8[32768]{0}', space=vmem, size = 0x8000, scoped, tag = 'input window, operand 5, single buffered']
    #allocation9 [shape = 's32[1]{0}', space=sflag, size = 0x4, scoped, tag = 'scoped memory for tpu_custom_call.1']
    #allocation10 [shape = 'u8[65536]{0}', space=vmem, size = 0x10000, scoped, tag = 'input window, operand 7, single buffered']
    #allocation11 [shape = 'u8[8192]{0}', space=vmem, size = 0x2000, scoped, tag = 'output window, operand 0, single buffered']
    %14 = vsyncpa [#allocation3], 0
    %15 = vsyncpa [#allocation6], 0
    %16 = vsyncpa [#allocation9], 0
    %17 = vsyncpa [#allocation4], 0
    // Predicated region
    $region2: #{tpu_custom_call.1} parent=1 // pred_check
      _
    $region3: #{tpu_custom_call.1} parent=1 // pred_check_branch
      %19 = sbr.rel (0) target = $region5
    $region4: #{tpu_custom_call.1} parent=1 // pred_region
      %s21 = ssub.s32 128, 128
      %22 = vsyncadd [#allocation3], %s21
      %s24 = sshll.u32 [#allocation2], 4
      %s25 = int_to_ptr.vmem [resolvable:$true] %s24
      %27 = dma.hbm_to_vmem [thread:$0]  %s0, 128, %s25, [#allocation3]
    $region5: #{tpu_custom_call.1} parent=1 // pred_fallthru
      _
    // Predicated region
    $region6: #{tpu_custom_call.1} parent=1 // pred_check
      _
    $region7: #{tpu_custom_call.1} parent=1 // pred_check_branch
      %29 = sbr.rel (0) target = $region9
    $region8: #{tpu_custom_call.1} parent=1 // pred_region
      %s31 = ssub.s32 128, 128
      %32 = vsyncadd [#allocation6], %s31
      %s34 = sshll.u32 [#allocation5], 4
      %s35 = int_to_ptr.vmem [resolvable:$true] %s34
      %37 = dma.hbm_to_vmem [thread:$0]  %s1, 128, %s35, [#allocation6]
    $region9: #{tpu_custom_call.1} parent=1 // pred_fallthru
      _
    // Predicated region
    $region10: #{tpu_custom_call.1} parent=1 // pred_check
      _
    $region11: #{tpu_custom_call.1} parent=1 // pred_check_branch
      %39 = sbr.rel (0) target = $region13
    $region12: #{tpu_custom_call.1} parent=1 // pred_region
      %s41 = ssub.s32 128, 128
      %42 = vsyncadd [#allocation6], %s41
      %s44 = sshll.u32 [#allocation7], 4
      %s45 = int_to_ptr.vmem [resolvable:$true] %s44
      %47 = dma.hbm_to_vmem [thread:$0]  %s2, 128, %s45, [#allocation6]
    $region13: #{tpu_custom_call.1} parent=1 // pred_fallthru
      _
    // Predicated region
    $region14: #{tpu_custom_call.1} parent=1 // pred_check
      _
    $region15: #{tpu_custom_call.1} parent=1 // pred_check_branch
      %49 = sbr.rel (0) target = $region17
    $region16: #{tpu_custom_call.1} parent=1 // pred_region
      _
    $region17: #{tpu_custom_call.1} parent=1 // pred_fallthru
      _
    // Predicated region
    $region18: #{tpu_custom_call.1} parent=1 // pred_check
      _
    $region19: #{tpu_custom_call.1} parent=1 // pred_check_branch
      %51 = sbr.rel (0) target = $region21
    $region20: #{tpu_custom_call.1} parent=1 // pred_region
      _
    $region21: #{tpu_custom_call.1} parent=1 // pred_fallthru
      _
    // Predicated region
    $region22: #{tpu_custom_call.1} parent=1 // pred_check
      _
    $region23: #{tpu_custom_call.1} parent=1 // pred_check_branch
      %53 = sbr.rel (0) target = $region25
    $region24: #{tpu_custom_call.1} parent=1 // pred_region
      %s55 = ssub.s32 1024, 1024
      %56 = vsyncadd [#allocation9], %s55
      %s57 = sshll.u32 [#allocation8], 4
      %s58 = int_to_ptr.vmem [resolvable:$true] %s57
      %63 = dma.hbm_to_vmem [thread:$0]  %s5, 1024, %s58, [#allocation9], 128, 128, 8
    $region25: #{tpu_custom_call.1} parent=1 // pred_fallthru
      _
    // Predicated region
    $region26: #{tpu_custom_call.1} parent=1 // pred_check
      _
    $region27: #{tpu_custom_call.1} parent=1 // pred_check_branch
      %65 = sbr.rel (0) target = $region29
    $region28: #{tpu_custom_call.1} parent=1 // pred_region
      _
    $region29: #{tpu_custom_call.1} parent=1 // pred_fallthru
      _
    // Predicated region
    $region30: #{tpu_custom_call.1} parent=1 // pred_check
      _
    $region31: #{tpu_custom_call.1} parent=1 // pred_check_branch
      %67 = sbr.rel (0) target = $region33
    $region32: #{tpu_custom_call.1} parent=1 // pred_region
      %s69 = ssub.s32 2048, 2048
      %70 = vsyncadd [#allocation9], %s69
      %s71 = sshll.u32 [#allocation10], 4
      %s72 = int_to_ptr.vmem [resolvable:$true] %s71
      %77 = dma.hbm_to_vmem [thread:$0]  %s7, 2048, %s72, [#allocation9], 256, 256, 16
    $region33: #{tpu_custom_call.1} parent=1 // pred_fallthru
      _
    // Predicated region
    $region34: #{tpu_custom_call.1} parent=1 // pred_check
      _
    $region35: #{tpu_custom_call.1} parent=1 // pred_check_branch
      %79 = sbr.rel (0) target = $region37
    $region36: #{tpu_custom_call.1} parent=1 // pred_region
      _
    $region37: #{tpu_custom_call.1} parent=1 // pred_fallthru
      _
    // Predicated region
    $region38: #{tpu_custom_call.1} parent=1 // pred_check
      _
    $region39: #{tpu_custom_call.1} parent=1 // pred_check_branch
      %81 = sbr.rel (0) target = $region41
    $region40: #{tpu_custom_call.1} parent=1 // pred_region
      %82 = dma.done [#allocation3], 128
    $region41: #{tpu_custom_call.1} parent=1 // pred_fallthru
      _
    // Predicated region
    $region42: #{tpu_custom_call.1} parent=1 // pred_check
      _
    $region43: #{tpu_custom_call.1} parent=1 // pred_check_branch
      %84 = sbr.rel (0) target = $region45
    $region44: #{tpu_custom_call.1} parent=1 // pred_region
      %85 = dma.done [#allocation6], 128
    $region45: #{tpu_custom_call.1} parent=1 // pred_fallthru
      _
    // Predicated region
    $region46: #{tpu_custom_call.1} parent=1 // pred_check
      _
    $region47: #{tpu_custom_call.1} parent=1 // pred_check_branch
      %87 = sbr.rel (0) target = $region49
    $region48: #{tpu_custom_call.1} parent=1 // pred_region
      %88 = dma.done [#allocation6], 128
    $region49: #{tpu_custom_call.1} parent=1 // pred_fallthru
      _
    // Predicated region
    $region50: #{tpu_custom_call.1} parent=1 // pred_check
      _
    $region51: #{tpu_custom_call.1} parent=1 // pred_check_branch
      %90 = sbr.rel (0) target = $region53
    $region52: #{tpu_custom_call.1} parent=1 // pred_region
      %91 = dma.done [#allocation9], 1024
    $region53: #{tpu_custom_call.1} parent=1 // pred_fallthru
      _
    // Predicated region
    $region54: #{tpu_custom_call.1} parent=1 // pred_check
      _
    $region55: #{tpu_custom_call.1} parent=1 // pred_check_branch
      %93 = sbr.rel (0) target = $region57
    $region56: #{tpu_custom_call.1} parent=1 // pred_region
      %94 = dma.done [#allocation9], 2048
    $region57: #{tpu_custom_call.1} parent=1 // pred_fallthru
      _
    %v95 = vld [vmem:[#allocation2] sm:$0xff]
    %v96 = vld [vmem:[#allocation5] sm:$0xff]
    %v97 = vld [vmem:[#allocation7] sm:$0xff]
    %v98 = vld [vmem:[%s3] sm:$0x3]
    %vm99 = vcmask 15360
    %v101 = vsel %vm99, %v96, 0
    %vm103 = vcmask 1041408
    %v105 = vsel %vm103, %v98, 0
    %107 = vmatprep.subr.mxu0 0.0
    %108 = vmatpush1.msra.mxu0 %v105
    %109 = vmatprep.subr.mxu0 0.0
    %110 = vmatpush1.msra.mxu0 0.0
    %111 = vmatprep.subr.mxu0 0.0
    %112 = vmatpush1.msra.mxu0 0.0
    %113 = vmatprep.subr.mxu0 0.0
    %114 = vmatpush1.msra.mxu0 0.0
    %115 = vmatprep.subr.mxu0 0.0
    %116 = vmatpush1.msra.mxu0 0.0
    %117 = vmatprep.subr.mxu0 0.0
    %118 = vmatpush1.msra.mxu0 0.0
    %119 = vmatprep.subr.mxu0 0.0
    %120 = vmatpush1.msra.mxu0 0.0
    %121 = vmatprep.subr.mxu0 0.0
    %122 = vmatpush1.msra.mxu0 0.0
    %123 = vmatprep.subr.mxu0 0.0
    %124 = vmatpush1.msra.mxu0 0.0
    %125 = vmatprep.subr.mxu0 0.0
    %126 = vmatpush1.msra.mxu0 0.0
    %127 = vmatprep.subr.mxu0 0.0
    %128 = vmatpush1.msra.mxu0 0.0
    %129 = vmatprep.subr.mxu0 0.0
    %130 = vmatpush1.msra.mxu0 0.0
    %131 = vmatprep.subr.mxu0 0.0
    %132 = vmatpush1.msra.mxu0 0.0
    %133 = vmatprep.subr.mxu0 0.0
    %134 = vmatpush1.msra.mxu0 0.0
    %135 = vmatprep.subr.mxu0 0.0
    %136 = vmatpush1.msra.mxu0 0.0
    %137 = vmatprep.subr.mxu0 0.0
    %138 = vmatpush1.msra.mxu0 0.0
    %139 = vmatprep.subr.mxu0 0.0
    %140 = vmatpush1.msra.mxu0 0.0
    %141 = vmatprep.subr.mxu0 0.0
    %142 = vmatpush1.msra.mxu0 0.0
    %143 = vmatprep.subr.mxu0 0.0
    %144 = vmatpush1.msra.mxu0 0.0
    %145 = vmatprep.subr.mxu0 0.0
    %146 = vmatpush1.msra.mxu0 0.0
    %147 = vmatprep.subr.mxu0 0.0
    %148 = vmatpush1.msra.mxu0 0.0
    %149 = vmatprep.subr.mxu0 0.0
    %150 = vmatpush1.msra.mxu0 0.0
    %151 = vmatprep.subr.mxu0 0.0
    %152 = vmatpush1.msra.mxu0 0.0
    %153 = vmatprep.subr.mxu0 0.0
    %154 = vmatpush1.msra.mxu0 0.0
    %155 = vmatprep.subr.mxu0 0.0
    %156 = vmatpush1.msra.mxu0 0.0
    %157 = vmatprep.subr.mxu0 0.0
    %158 = vmatpush1.msra.mxu0 0.0
    %159 = vmatprep.subr.mxu0 0.0
    %160 = vmatpush1.msra.mxu0 0.0
    %161 = vmatprep.subr.mxu0 0.0
    %162 = vmatpush1.msra.mxu0 0.0
    %163 = vmatprep.subr.mxu0 0.0
    %164 = vmatpush1.msra.mxu0 0.0
    %165 = vmatprep.subr.mxu0 0.0
    %166 = vmatpush1.msra.mxu0 0.0
    %167 = vmatprep.subr.mxu0 0.0
    %168 = vmatpush1.msra.mxu0 0.0
    %169 = vmatprep.subr.mxu0 0.0
    %170 = vmatpush1.msra.mxu0 0.0
    %171 = vmatprep.mubr.f32.mxu0 0.0
    %172 = vmatmul.mubr.f32.gmra.mrb[0].mxu0 %v101
    %v173 = vpop.f32.mrb[0].mxu0
    %v174 = vadd.f32 0.0, %v173
    %v175 = vpop.f32.mrb[0].mxu0
    %176 = vdwg.mxu0
    %vm177 = vcmask 64512
    %v179 = vsel %vm177, %v95, 0
    %181 = vmatprep.subr.mxu0 0.0
    %182 = vmatpush1.msra.mxu0 %v97
    %183 = vmatprep.subr.mxu0 0.0
    %184 = vmatpush1.msra.mxu0 0.0
    %185 = vmatprep.subr.mxu0 0.0
    %186 = vmatpush1.msra.mxu0 0.0
    %187 = vmatprep.subr.mxu0 0.0
    %188 = vmatpush1.msra.mxu0 0.0
    %189 = vmatprep.subr.mxu0 0.0
    %190 = vmatpush1.msra.mxu0 0.0
    %191 = vmatprep.subr.mxu0 0.0
    %192 = vmatpush1.msra.mxu0 0.0
    %193 = vmatprep.subr.mxu0 0.0
    %194 = vmatpush1.msra.mxu0 0.0
    %195 = vmatprep.subr.mxu0 0.0
    %196 = vmatpush1.msra.mxu0 0.0
    %197 = vmatprep.subr.mxu0 0.0
    %198 = vmatpush1.msra.mxu0 0.0
    %199 = vmatprep.subr.mxu0 0.0
    %200 = vmatpush1.msra.mxu0 0.0
    %201 = vmatprep.subr.mxu0 0.0
    %202 = vmatpush1.msra.mxu0 0.0
    %203 = vmatprep.subr.mxu0 0.0
    %204 = vmatpush1.msra.mxu0 0.0
    %205 = vmatprep.subr.mxu0 0.0
    %206 = vmatpush1.msra.mxu0 0.0
    %207 = vmatprep.subr.mxu0 0.0
    %208 = vmatpush1.msra.mxu0 0.0
    %209 = vmatprep.subr.mxu0 0.0
    %210 = vmatpush1.msra.mxu0 0.0
    %211 = vmatprep.subr.mxu0 0.0
    %212 = vmatpush1.msra.mxu0 0.0
    %213 = vmatprep.subr.mxu0 0.0
    %214 = vmatpush1.msra.mxu0 0.0
    %215 = vmatprep.subr.mxu0 0.0
    %216 = vmatpush1.msra.mxu0 0.0
    %217 = vmatprep.subr.mxu0 0.0
    %218 = vmatpush1.msra.mxu0 0.0
    %219 = vmatprep.subr.mxu0 0.0
    %220 = vmatpush1.msra.mxu0 0.0
    %221 = vmatprep.subr.mxu0 0.0
    %222 = vmatpush1.msra.mxu0 0.0
    %223 = vmatprep.subr.mxu0 0.0
    %224 = vmatpush1.msra.mxu0 0.0
    %225 = vmatprep.subr.mxu0 0.0
    %226 = vmatpush1.msra.mxu0 0.0
    %227 = vmatprep.subr.mxu0 0.0
    %228 = vmatpush1.msra.mxu0 0.0
    %229 = vmatprep.subr.mxu0 0.0
    %230 = vmatpush1.msra.mxu0 0.0
    %231 = vmatprep.subr.mxu0 0.0
    %232 = vmatpush1.msra.mxu0 0.0
    %233 = vmatprep.subr.mxu0 0.0
    %234 = vmatpush1.msra.mxu0 0.0
    %235 = vmatprep.subr.mxu0 0.0
    %236 = vmatpush1.msra.mxu0 0.0
    %237 = vmatprep.subr.mxu0 0.0
    %238 = vmatpush1.msra.mxu0 0.0
    %239 = vmatprep.subr.mxu0 0.0
    %240 = vmatpush1.msra.mxu0 0.0
    %241 = vmatprep.subr.mxu0 0.0
    %242 = vmatpush1.msra.mxu0 0.0
    %243 = vmatprep.subr.mxu0 0.0
    %244 = vmatpush1.msra.mxu0 0.0
    %245 = vmatprep.mubr.f32.mxu0 0.0
    %246 = vmatmul.mubr.f32.gmra.mrb[0].mxu0 %v179
    %v247 = vpop.f32.mrb[0].mxu0
    %v248 = vadd.f32 %v174, %v247
    %v249 = vpop.f32.mrb[0].mxu0
    %250 = vdwg.mxu0
    %v251 = vld [vmem:[%s4] sm:$0x1]
    %v253 = vlaneseq
    %v254 = vshrl.u32 %v253, 7
    %v255 = vsub.s32 0, %v254
    %v256 = vrot.slane %v251, %v255
    %v258 = vadd.f32 %v248, %v256
    %v259 = vmax.f32 %v258, 0.0
    %v260 = vld [vmem:[#allocation8] sm:$0xff]
    %v261 = vld [vmem:[#allocation8 + $0x8] sm:$0xff]
    %v262 = vld [vmem:[#allocation8 + $0x10] sm:$0xff]
    %v263 = vld [vmem:[#allocation8 + $0x18] sm:$0xff]
    %v264 = vld [vmem:[#allocation8 + $0x20] sm:$0xff]
    %v265 = vld [vmem:[#allocation8 + $0x28] sm:$0xff]
    %v266 = vld [vmem:[#allocation8 + $0x30] sm:$0xff]
    %v267 = vld [vmem:[#allocation8 + $0x38] sm:$0xff]
    %v268 = vld [vmem:[%s6] sm:$0x1]
    %v270 = vlaneseq
    %v271 = vshrl.u32 %v270, 7
    %v272 = vsub.s32 0, %v271
    %v273 = vrot.slane %v268, %v272
    %vm275 = vcmask 523264
    %v277 = vsel %vm275, %v259, 0
    %279 = vmatprep.subr.mxu0 0.0
    %280 = vmatpush1.msra.mxu0 %v260
    %281 = vmatprep.subr.mxu0 0.0
    %282 = vmatpush1.msra.mxu0 %v261
    %283 = vmatprep.subr.mxu0 0.0
    %284 = vmatpush1.msra.mxu0 %v262
    %285 = vmatprep.subr.mxu0 0.0
    %286 = vmatpush1.msra.mxu0 %v263
    %287 = vmatprep.subr.mxu0 0.0
    %288 = vmatpush1.msra.mxu0 %v264
    %289 = vmatprep.subr.mxu0 0.0
    %290 = vmatpush1.msra.mxu0 %v265
    %291 = vmatprep.subr.mxu0 0.0
    %292 = vmatpush1.msra.mxu0 %v266
    %293 = vmatprep.subr.mxu0 0.0
    %294 = vmatpush1.msra.mxu0 %v267
    %295 = vmatprep.subr.mxu0 0.0
    %296 = vmatpush1.msra.mxu0 0.0
    %297 = vmatprep.subr.mxu0 0.0
    %298 = vmatpush1.msra.mxu0 0.0
    %299 = vmatprep.subr.mxu0 0.0
    %300 = vmatpush1.msra.mxu0 0.0
    %301 = vmatprep.subr.mxu0 0.0
    %302 = vmatpush1.msra.mxu0 0.0
    %303 = vmatprep.subr.mxu0 0.0
    %304 = vmatpush1.msra.mxu0 0.0
    %305 = vmatprep.subr.mxu0 0.0
    %306 = vmatpush1.msra.mxu0 0.0
    %307 = vmatprep.subr.mxu0 0.0
    %308 = vmatpush1.msra.mxu0 0.0
    %309 = vmatprep.subr.mxu0 0.0
    %310 = vmatpush1.msra.mxu0 0.0
    %311 = vmatprep.subr.mxu0 0.0
    %312 = vmatpush1.msra.mxu0 0.0
    %313 = vmatprep.subr.mxu0 0.0
    %314 = vmatpush1.msra.mxu0 0.0
    %315 = vmatprep.subr.mxu0 0.0
    %316 = vmatpush1.msra.mxu0 0.0
    %317 = vmatprep.subr.mxu0 0.0
    %318 = vmatpush1.msra.mxu0 0.0
    %319 = vmatprep.subr.mxu0 0.0
    %320 = vmatpush1.msra.mxu0 0.0
    %321 = vmatprep.subr.mxu0 0.0
    %322 = vmatpush1.msra.mxu0 0.0
    %323 = vmatprep.subr.mxu0 0.0
    %324 = vmatpush1.msra.mxu0 0.0
    %325 = vmatprep.subr.mxu0 0.0
    %326 = vmatpush1.msra.mxu0 0.0
    %327 = vmatprep.subr.mxu0 0.0
    %328 = vmatpush1.msra.mxu0 0.0
    %329 = vmatprep.subr.mxu0 0.0
    %330 = vmatpush1.msra.mxu0 0.0
    %331 = vmatprep.subr.mxu0 0.0
    %332 = vmatpush1.msra.mxu0 0.0
    %333 = vmatprep.subr.mxu0 0.0
    %334 = vmatpush1.msra.mxu0 0.0
    %335 = vmatprep.subr.mxu0 0.0
    %336 = vmatpush1.msra.mxu0 0.0
    %337 = vmatprep.subr.mxu0 0.0
    %338 = vmatpush1.msra.mxu0 0.0
    %339 = vmatprep.subr.mxu0 0.0
    %340 = vmatpush1.msra.mxu0 0.0
    %341 = vmatprep.subr.mxu0 0.0
    %342 = vmatpush1.msra.mxu0 0.0
    %343 = vmatprep.mubr.f32.mxu0 0.0
    %344 = vmatmul.mubr.f32.gmra.mrb[0].mxu0 %v277
    %v345 = vpop.f32.mrb[0].mxu0
    %v346 = vadd.f32 %v273, %v345
    %v347 = vpop.f32.mrb[0].mxu0
    %348 = vdwg.mxu0
    %v349 = vmax.f32 %v346, 0.0
    %v350 = vld [vmem:[#allocation10] sm:$0xff]
    %v351 = vld [vmem:[#allocation10 + $0x8] sm:$0xff]
    %v352 = vld [vmem:[#allocation10 + $0x10] sm:$0xff]
    %v353 = vld [vmem:[#allocation10 + $0x18] sm:$0xff]
    %v354 = vld [vmem:[#allocation10 + $0x20] sm:$0xff]
    %v355 = vld [vmem:[#allocation10 + $0x28] sm:$0xff]
    %v356 = vld [vmem:[#allocation10 + $0x30] sm:$0xff]
    %v357 = vld [vmem:[#allocation10 + $0x38] sm:$0xff]
    %v358 = vld [vmem:[#allocation10 + $0x40] sm:$0xff]
    %v359 = vld [vmem:[#allocation10 + $0x48] sm:$0xff]
    %v360 = vld [vmem:[#allocation10 + $0x50] sm:$0xff]
    %v361 = vld [vmem:[#allocation10 + $0x58] sm:$0xff]
    %v362 = vld [vmem:[#allocation10 + $0x60] sm:$0xff]
    %v363 = vld [vmem:[#allocation10 + $0x68] sm:$0xff]
    %v364 = vld [vmem:[#allocation10 + $0x70] sm:$0xff]
    %v365 = vld [vmem:[#allocation10 + $0x78] sm:$0xff]
    %v366 = vld [vmem:[%s8] sm:$0x3]
    %v368 = vlaneseq
    %v369 = vshrl.u32 %v368, 7
    %v370 = vsub.s32 0, %v369
    %v371 = vrot.slane %v366, %v370
    %v372 = vlaneseq
    %v373 = vshrl.u32 %v372, 7
    %v374 = vsub.s32 1, %v373
    %v375 = vrot.slane %v366, %v374
    %v379 = vsel %vm275, %v349, 0
    %381 = vmatprep.subr.mxu0 %v351
    %382 = vmatpush1.msra.mxu0 %v350
    %383 = vmatprep.subr.mxu0 %v353
    %384 = vmatpush1.msra.mxu0 %v352
    %385 = vmatprep.subr.mxu0 %v355
    %386 = vmatpush1.msra.mxu0 %v354
    %387 = vmatprep.subr.mxu0 %v357
    %388 = vmatpush1.msra.mxu0 %v356
    %389 = vmatprep.subr.mxu0 %v359
    %390 = vmatpush1.msra.mxu0 %v358
    %391 = vmatprep.subr.mxu0 %v361
    %392 = vmatpush1.msra.mxu0 %v360
    %393 = vmatprep.subr.mxu0 %v363
    %394 = vmatpush1.msra.mxu0 %v362
    %395 = vmatprep.subr.mxu0 %v365
    %396 = vmatpush1.msra.mxu0 %v364
    %397 = vmatprep.subr.mxu0 0.0
    %398 = vmatpush1.msra.mxu0 0.0
    %399 = vmatprep.subr.mxu0 0.0
    %400 = vmatpush1.msra.mxu0 0.0
    %401 = vmatprep.subr.mxu0 0.0
    %402 = vmatpush1.msra.mxu0 0.0
    %403 = vmatprep.subr.mxu0 0.0
    %404 = vmatpush1.msra.mxu0 0.0
    %405 = vmatprep.subr.mxu0 0.0
    %406 = vmatpush1.msra.mxu0 0.0
    %407 = vmatprep.subr.mxu0 0.0
    %408 = vmatpush1.msra.mxu0 0.0
    %409 = vmatprep.subr.mxu0 0.0
    %410 = vmatpush1.msra.mxu0 0.0
    %411 = vmatprep.subr.mxu0 0.0
    %412 = vmatpush1.msra.mxu0 0.0
    %413 = vmatprep.subr.mxu0 0.0
    %414 = vmatpush1.msra.mxu0 0.0
    %415 = vmatprep.subr.mxu0 0.0
    %416 = vmatpush1.msra.mxu0 0.0
    %417 = vmatprep.subr.mxu0 0.0
    %418 = vmatpush1.msra.mxu0 0.0
    %419 = vmatprep.subr.mxu0 0.0
    %420 = vmatpush1.msra.mxu0 0.0
    %421 = vmatprep.subr.mxu0 0.0
    %422 = vmatpush1.msra.mxu0 0.0
    %423 = vmatprep.subr.mxu0 0.0
    %424 = vmatpush1.msra.mxu0 0.0
    %425 = vmatprep.subr.mxu0 0.0
    %426 = vmatpush1.msra.mxu0 0.0
    %427 = vmatprep.subr.mxu0 0.0
    %428 = vmatpush1.msra.mxu0 0.0
    %429 = vmatprep.subr.mxu0 0.0
    %430 = vmatpush1.msra.mxu0 0.0
    %431 = vmatprep.subr.mxu0 0.0
    %432 = vmatpush1.msra.mxu0 0.0
    %433 = vmatprep.subr.mxu0 0.0
    %434 = vmatpush1.msra.mxu0 0.0
    %435 = vmatprep.subr.mxu0 0.0
    %436 = vmatpush1.msra.mxu0 0.0
    %437 = vmatprep.subr.mxu0 0.0
    %438 = vmatpush1.msra.mxu0 0.0
    %439 = vmatprep.subr.mxu0 0.0
    %440 = vmatpush1.msra.mxu0 0.0
    %441 = vmatprep.subr.mxu0 0.0
    %442 = vmatpush1.msra.mxu0 0.0
    %443 = vmatprep.subr.mxu0 0.0
    %444 = vmatpush1.msra.mxu0 0.0
    %445 = vmatprep.mubr.f32.mxu0 0.0
    %446 = vmatmul.mubr.f32.gmra.mrb[0].mxu0 %v379
    %v447 = vpop.f32.mrb[0].mxu0
    %v448 = vadd.f32 %v371, %v447
    %v449 = vpop.f32.mrb[0].mxu0
    %v450 = vadd.f32 %v375, %v449
    %451 = vdwg.mxu0
    %452 = vst [vmem:[#allocation11] sm:$0xff] %v448
    %453 = vst [vmem:[#allocation11 + $0x8] sm:$0xff] %v450
    // Predicated region
    $region58: #{tpu_custom_call.1} parent=1 // pred_check
      _
    $region59: #{tpu_custom_call.1} parent=1 // pred_check_branch
      %455 = sbr.rel (0) target = $region61
    $region60: #{tpu_custom_call.1} parent=1 // pred_region
      %s457 = ssub.s32 256, 256
      %458 = vsyncadd [#allocation4], %s457
      %s460 = sshll.u32 [#allocation11], 4
      %s461 = int_to_ptr.vmem [resolvable:$true] %s460
      %463 = dma.vmem_to_hbm [thread:$0]  %s461, 256, %s9, [#allocation4]
    $region61: #{tpu_custom_call.1} parent=1 // pred_fallthru
      _
    // Predicated region
    $region62: #{tpu_custom_call.1} parent=1 // pred_check
      _
    $region63: #{tpu_custom_call.1} parent=1 // pred_check_branch
      %465 = sbr.rel (0) target = $region65
    $region64: #{tpu_custom_call.1} parent=1 // pred_region
      %466 = dma.done [#allocation4], 256
    $region65: #{tpu_custom_call.1} parent=1 // pred_fallthru
      _
    %467 = vsyncpa [#allocation3], 1
    %468 = vsyncpa [#allocation6], 1
    %469 = vsyncpa [#allocation9], 1
    %470 = vsyncpa [#allocation4], 1

</llo_original>
